<compile_context>
chip_gen: v7x
topology: tpu7x:2x2x1
jax: 0.10.0
libtpu: 0.0.40
codegen_flags: <defaults>
</compile_context>

<pallas_src>
import functools

import jax
import jax.numpy as jnp
import numpy as np
from jax.experimental import pallas as pl
from jax.experimental.pallas import tpu as pltpu


def _round_up(x, m):
    return (x + m - 1) // m * m


def _masked_mse_kernel(pred_ref, target_ref, mask_ref, ca_row_ref, pair_ref,
                       out_ref,
                       acc_n3, acc_nm, acc_nt, acc_s3, acc_st, acc_ca, ca_prev,
                       *, expected_ca_dist):
    j = pl.program_id(1)
    nj = pl.num_programs(1)

    @pl.when(j == 0)
    def _init():
        acc_n3[...] = jnp.zeros_like(acc_n3)
        acc_nm[...] = jnp.zeros_like(acc_nm)
        acc_nt[...] = jnp.zeros_like(acc_nt)
        acc_s3[...] = jnp.zeros_like(acc_s3)
        acc_st[...] = jnp.zeros_like(acc_st)
        acc_ca[...] = jnp.zeros_like(acc_ca)

    # Per-coordinate planes of this (row-block, lane-block) tile: [NR, TL] f32.
    p0 = pred_ref[0]
    p1 = pred_ref[1]
    p2 = pred_ref[2]
    t0 = target_ref[0]
    t1 = target_ref[1]
    t2 = target_ref[2]
    tl = p0.shape[1]

    # --- masked coordinate MSE terms (full-width VPU ops, no reductions) ---
    d0 = p0 - t0
    d1 = p1 - t1
    d2 = p2 - t2
    coord = d0 * d0 + d1 * d1 + d2 * d2                       # [NR, TL]

    tmask_b = (t0 != 0.0) | (t1 != 0.0) | (t2 != 0.0)          # target present
    mvalid_b = mask_ref[...] != 0                              # mask valid
    c3_b = mvalid_b & tmask_b                                  # case3

    tmask = tmask_b.astype(jnp.float32)
    mvalid = mvalid_b.astype(jnp.float32)
    c3 = c3_b.astype(jnp.float32)

    acc_n3[...] += c3
    acc_nm[...] += mvalid
    acc_nt[...] += tmask
    acc_s3[...] += coord * c3
    acc_st[...] += coord * tmask

    # --- CA-CA bond term (atom index 1 rows only, selected via ca_row mask) ---
    ca_row = ca_row_ref[...]    # [NR, 1]  1.0 on CA rows of real batch entries
    pair_ok = pair_ref[...]     # [1, TL]  1.0 where this lane closes a valid
                                #          within-block residue pair (l-1, l)

    r0 = pltpu.roll(p0, shift=1, axis=1)
    r1 = pltpu.roll(p1, shift=1, axis=1)
    r2 = pltpu.roll(p2, shift=1, axis=1)
    dx = p0 - r0
    dy = p1 - r1
    dz = p2 - r2
    dist = jnp.sqrt(dx * dx + dy * dy + dz * dz)
    dd = dist - expected_ca_dist
    acc_ca[...] += (dd * dd) * ca_row * pair_ok

    # Boundary pair between this lane block's first residue and the previous
    # block's last residue (carried in VMEM scratch).
    @pl.when(j > 0)
    def _boundary():
        bx = p0[:, 0:1] - ca_prev[0]
        by = p1[:, 0:1] - ca_prev[1]
        bz = p2[:, 0:1] - ca_prev[2]
        bdist = jnp.sqrt(bx * bx + by * by + bz * bz)
        bdd = bdist - expected_ca_dist
        acc_ca[:, 0:1] += (bdd * bdd) * ca_row

    # Carry this block's last residue column for the next block's boundary pair.
    ca_prev[0] = p0[:, tl - 1:tl]
    ca_prev[1] = p1[:, tl - 1:tl]
    ca_prev[2] = p2[:, tl - 1:tl]

    # --- per-row-block finalize: one cross-lane/sublane reduction each ---
    @pl.when(j == nj - 1)
    def _finalize():
        def _tot(ref):  # [NR, TL] -> (1, 1)
            return jnp.sum(jnp.sum(ref[...], axis=1, keepdims=True),
                           axis=0, keepdims=True)

        lane = jax.lax.broadcasted_iota(jnp.int32, (1, 8), 1)

        def _sel(k):
            return (lane == k).astype(jnp.float32)

        row = (_tot(acc_n3) * _sel(0)
               + _tot(acc_nm) * _sel(1)
               + _tot(acc_nt) * _sel(2)
               + _tot(acc_s3) * _sel(3)
               + _tot(acc_st) * _sel(4)
               + _tot(acc_ca) * _sel(5))
        out_ref[0] = row


def _select_tiles(B, L, A):
    """Pick row/lane block sizes: big tiles, >=2 row blocks for v7x dual-TC,
    >=4 total pipeline steps when the shapes allow it."""
    R = B * A
    Lp0 = _round_up(L, 128)
    TL = min(Lp0, 2048)

    # rows per block: multiple of 8, each f32 input tile capped at ~4 MiB
    nr_cap = max(8, ((4 * 1024 * 1024) // (3 * TL * 4)) // 8 * 8)
    Rp8 = _round_up(R, 8)
    NR = min(nr_cap, Rp8)
    if Rp8 > 8 and NR == Rp8:
        NR = _round_up((Rp8 + 1) // 2, 8)   # split -> both v7x cores get work
    Rp = _round_up(R, NR)
    n_rblk = Rp // NR

    # lane blocks: aim for a total pipeline depth of >= 4 grid steps
    want_lblk = max(1, -(-4 // n_rblk))
    TL = max(128, min(TL, _round_up(-(-Lp0 // want_lblk), 128)))
    Lp = _round_up(L, TL)
    n_lblk = Lp // TL
    return NR, Rp, n_rblk, TL, Lp, n_lblk


@functools.partial(jax.jit, static_argnames=("mask_penalty", "ca_bond_penalty",
                                             "backbone_weight",
                                             "expected_ca_dist"))
def masked_mse_loss(pred, target, mask, *, mask_penalty=1.0, ca_bond_penalty=40.0,
                    backbone_weight=8.0, expected_ca_dist=3.8):
    del backbone_weight  # no effect on any returned value (see header note)
    B, L, A, C = pred.shape
    assert C == 3 and A >= 2
    R = B * A

    NR, Rp, n_rblk, TL, Lp, n_lblk = _select_tiles(B, L, A)

    f32 = jnp.float32
    # Layout plumbing (fused by XLA under jit): xyz to the leading axis,
    # residues onto lanes, (batch, atom) fused into one sublane axis.
    # TODO(synk): if the upstream model can emit pred/target directly in this
    # [3, B*A, L] channels-first layout, pass them through and skip the
    # transpose entirely -- it is the single largest HBM cost here.
    pred_t = jnp.transpose(pred.astype(f32), (3, 0, 2, 1)).reshape(3, R, L)
    target_t = jnp.transpose(target.astype(f32), (3, 0, 2, 1)).reshape(3, R, L)
    mask_t = jnp.transpose(mask.astype(jnp.int8), (0, 2, 1)).reshape(R, L)

    pad_r, pad_l = Rp - R, Lp - L
    if pad_r or pad_l:
        pred_t = jnp.pad(pred_t, ((0, 0), (0, pad_r), (0, pad_l)))
        target_t = jnp.pad(target_t, ((0, 0), (0, pad_r), (0, pad_l)))
        mask_t = jnp.pad(mask_t, ((0, pad_r), (0, pad_l)))

    # Tiny precomputed validity masks (compile-time constants under jit):
    #   ca_row_mask: fused row is the CA atom (a == 1) of a real batch entry.
    #   pair_mask  : lane closes a within-block residue pair (l % TL != 0) and
    #                is a real residue (l < L); block-boundary pairs are handled
    #                in-kernel via the carry.
    rows = jnp.arange(Rp, dtype=jnp.int32)
    ca_row_mask = (((rows % A) == 1) & (rows < R)).astype(f32).reshape(Rp, 1)
    lanes = jnp.arange(Lp, dtype=jnp.int32)
    pair_mask = ((lanes % TL != 0) & (lanes < L)).astype(f32).reshape(1, Lp)

    kernel = functools.partial(_masked_mse_kernel,
                               expected_ca_dist=float(expected_ca_dist))

    in_tile = 3 * NR * TL * 4
    vmem_est = (4 * in_tile            # pred + target, double-buffered
                + 2 * NR * TL          # int8 mask tiles
                + 6 * NR * TL * 4      # accumulators
                + (2 << 20))           # slack: carry, tiny masks, out, misc
    vmem_limit = int(min(max(vmem_est, 32 * 1024 * 1024), 48 * 1024 * 1024))

    out = pl.pallas_call(
        kernel,
        out_shape=jax.ShapeDtypeStruct((n_rblk, 1, 8), jnp.float32),
        grid_spec=pltpu.PrefetchScalarGridSpec(
            num_scalar_prefetch=0,
            grid=(n_rblk, n_lblk),
            in_specs=[
                pl.BlockSpec((3, NR, TL), lambda i, j: (0, i, j)),   # pred
                pl.BlockSpec((3, NR, TL), lambda i, j: (0, i, j)),   # target
                pl.BlockSpec((NR, TL), lambda i, j: (i, j)),         # mask
                pl.BlockSpec((NR, 1), lambda i, j: (i, 0)),          # ca_row_mask
                pl.BlockSpec((1, TL), lambda i, j: (0, j)),          # pair_mask
            ],
            out_specs=pl.BlockSpec((1, 1, 8), lambda i, j: (i, 0, 0)),
            scratch_shapes=[
                pltpu.VMEM((NR, TL), jnp.float32),    # count case3
                pltpu.VMEM((NR, TL), jnp.float32),    # count mask valid
                pltpu.VMEM((NR, TL), jnp.float32),    # count target present
                pltpu.VMEM((NR, TL), jnp.float32),    # sum coord * case3
                pltpu.VMEM((NR, TL), jnp.float32),    # sum coord * target present
                pltpu.VMEM((NR, TL), jnp.float32),    # sum (ca_dist - d0)^2
                pltpu.VMEM((3, NR, 1), jnp.float32),  # CA carry (prev block's last col)
            ]),
        compiler_params=pltpu.CompilerParams(
            dimension_semantics=("parallel", "arbitrary"),
            vmem_limit_bytes=vmem_limit),
    )(pred_t, target_t, mask_t, ca_row_mask, pair_mask)

    # Reduce per-row-block partials (also makes the "parallel" axis safe on
    # multi-TensorCore parts).
    tot = jnp.sum(out.reshape(n_rblk, 8), axis=0)
    n3, nm, nt, s3, st, ca_sq = tot[0], tot[1], tot[2], tot[3], tot[4], tot[5]
    n1 = nm - n3            # mask & ~target_present   (case1)
    n4 = nt - n3            # ~mask & target_present   (case4)
    s4 = st - s3            # coord error summed over case4

    ca_bond_loss = ca_sq / jnp.float32(B * (L - 1))
    total_loss = jnp.float32(ca_bond_penalty) * ca_bond_loss
    coord = jnp.where(n3 > 0, s3 / jnp.maximum(n3, 1.0), 0.0)
    mask_pen = (n1 * mask_penalty + s4 + n4 * mask_penalty) / (n1 + n4 + 1e-8)

    has_valid = (n1 + n3 + n4) > 0
    zero = jnp.float32(0.0)
    return {
        'total_loss': jnp.where(has_valid, total_loss, zero),
        'coord_loss': jnp.where(has_valid, coord, zero),
        'mask_penalty': jnp.where(has_valid, mask_pen, zero),
        'ca_bond_loss': jnp.where(has_valid, ca_bond_loss, zero),
    }


def _reference_loss(pred, target, mask, *, mask_penalty=1.0, ca_bond_penalty=40.0,
                    expected_ca_dist=3.8):
    """Pure-JAX port of the PyTorch forward (for correctness check only)."""
    tm = jnp.any(target != 0, axis=-1)
    coord_loss = jnp.sum((pred - target) ** 2, axis=-1)
    case1 = mask & ~tm
    case3 = mask & tm
    case4 = ~mask & tm
    total_loss = jnp.zeros_like(coord_loss)
    total_loss = jnp.where(case1, mask_penalty, total_loss)
    total_loss = jnp.where(case3, coord_loss, total_loss)
    total_loss = jnp.where(case4, coord_loss + mask_penalty, total_loss)
    pred_ca = pred[:, :, 1, :]
    ca_dists = jnp.linalg.norm(pred_ca[:, 1:] - pred_ca[:, :-1], axis=-1)
    ca_bond_loss = jnp.mean((ca_dists - expected_ca_dist) ** 2)
    n1 = jnp.sum(case1)
    n3 = jnp.sum(case3)
    n4 = jnp.sum(case4)
    valid = n1 + n3 + n4
    coord = jnp.where(n3 > 0, jnp.sum(jnp.where(case3, coord_loss, 0.0)) /
                      jnp.maximum(n3, 1), 0.0)
    mask_pen = (jnp.sum(jnp.where(case1, total_loss, 0.0)) +
                jnp.sum(jnp.where(case4, total_loss, 0.0))) / (n1 + n4 + 1e-8)
    z = jnp.float32(0.0)
    ok = valid > 0
    return {
        'total_loss': jnp.where(ok, ca_bond_penalty * ca_bond_loss, z),
        'coord_loss': jnp.where(ok, coord, z),
        'mask_penalty': jnp.where(ok, mask_pen, z),
        'ca_bond_loss': jnp.where(ok, ca_bond_loss, z),
    }


if __name__ == "__main__":
    def _run_case(B, L, A, key):
        k1, k2, k3, k4 = jax.random.split(key, 4)
        pred = jax.random.normal(k1, (B, L, A, 3), dtype=jnp.float32)
        # some target atoms are all-zero (missing coordinates)
        presence = jax.random.bernoulli(k3, 0.75, (B, L, A))
        target = jax.random.normal(k2, (B, L, A, 3), dtype=jnp.float32)
        target = jnp.where(presence[..., None], target, 0.0)
        mask = jax.random.bernoulli(k4, 0.6, (B, L, A))

        out = masked_mse_loss(pred, target, mask)
        out = jax.tree_util.tree_map(jax.block_until_ready, out)

        ref = _reference_loss(pred, target, mask)
        for name in ('total_loss', 'coord_loss', 'mask_penalty', 'ca_bond_loss'):
            np.testing.assert_allclose(np.asarray(out[name]),
                                       np.asarray(ref[name]),
                                       rtol=1e-4, atol=1e-4)

    key = jax.random.PRNGKey(0)
    k_a, k_b = jax.random.split(key)
    # canonical small case (single tile, single grid step)
    _run_case(B=2, L=8, A=4, key=k_a)
    # multi-block case: exercises row/lane tiling, row+lane padding, per-row-block
    # partial outputs (parallel axis) and the cross-block CA carry
    _run_case(B=3, L=300, A=4, key=k_b)

    print("KERNEL_OK")
</pallas_src>

<mosaic_0001>
module attributes {stable_mosaic.version = 11 : i64} {
  func.func @_masked_mse_kernel(%arg0: i32, %arg1: i32, %arg2: memref<3x8x128xf32, #tpu.memory_space<vmem>>, %arg3: memref<3x8x128xf32, #tpu.memory_space<vmem>>, %arg4: memref<8x128xi8, #tpu.memory_space<vmem>>, %arg5: memref<8x1xf32, #tpu.memory_space<vmem>>, %arg6: memref<1x128xf32, #tpu.memory_space<vmem>>, %arg7: memref<1x1x8xf32, #tpu.memory_space<vmem>>, %arg8: memref<8x128xf32, #tpu.memory_space<vmem>>, %arg9: memref<8x128xf32, #tpu.memory_space<vmem>>, %arg10: memref<8x128xf32, #tpu.memory_space<vmem>>, %arg11: memref<8x128xf32, #tpu.memory_space<vmem>>, %arg12: memref<8x128xf32, #tpu.memory_space<vmem>>, %arg13: memref<8x128xf32, #tpu.memory_space<vmem>>, %arg14: memref<3x8x1xf32, #tpu.memory_space<vmem>>) attributes {dimension_semantics = [#tpu.dimension_semantics<parallel>, #tpu.dimension_semantics<arbitrary>], iteration_bounds = array<i64: 1, 1>, scalar_prefetch = 0 : i64, scratch_operands = 7 : i64, tpu.core_type = #tpu.core_type<tc>, window_params = [{transform_indices = @transform_0, window_bounds = array<i64: 3, 8, 128>}, {transform_indices = @transform_1, window_bounds = array<i64: 3, 8, 128>}, {transform_indices = @transform_2, window_bounds = array<i64: 8, 128>}, {transform_indices = @transform_3, window_bounds = array<i64: 8, 1>}, {transform_indices = @transform_4, window_bounds = array<i64: 1, 128>}, {transform_indices = @transform_5, window_bounds = array<i64: 1, 1, 8>}]} {
    %c0_i32 = arith.constant 0 : i32
    %0 = arith.cmpi eq, %arg1, %c0_i32 : i32
    %1 = arith.extui %0 : i1 to i32
    %c0_i32_0 = arith.constant 0 : i32
    %2 = arith.cmpi ne, %1, %c0_i32_0 : i32
    scf.if %2 {
      %cst_64 = arith.constant 0.000000e+00 : f32
      %100 = vector.broadcast %cst_64 : f32 to vector<8x128xf32>
      %c0_65 = arith.constant 0 : index
      %c0_66 = arith.constant 0 : index
      %101 = vector.load %arg8[%c0_65, %c0_66] : memref<8x128xf32, #tpu.memory_space<vmem>>, vector<8x128xf32>
      tpu.vector_store %arg8[%c0_65, %c0_66], %100 {strides = array<i32>} : memref<8x128xf32, #tpu.memory_space<vmem>>, vector<8x128xf32>,
      %cst_67 = arith.constant 0.000000e+00 : f32
      %102 = vector.broadcast %cst_67 : f32 to vector<8x128xf32>
      %c0_68 = arith.constant 0 : index
      %c0_69 = arith.constant 0 : index
      %103 = vector.load %arg9[%c0_68, %c0_69] : memref<8x128xf32, #tpu.memory_space<vmem>>, vector<8x128xf32>
      tpu.vector_store %arg9[%c0_68, %c0_69], %102 {strides = array<i32>} : memref<8x128xf32, #tpu.memory_space<vmem>>, vector<8x128xf32>,
      %cst_70 = arith.constant 0.000000e+00 : f32
      %104 = vector.broadcast %cst_70 : f32 to vector<8x128xf32>
      %c0_71 = arith.constant 0 : index
      %c0_72 = arith.constant 0 : index
      %105 = vector.load %arg10[%c0_71, %c0_72] : memref<8x128xf32, #tpu.memory_space<vmem>>, vector<8x128xf32>
      tpu.vector_store %arg10[%c0_71, %c0_72], %104 {strides = array<i32>} : memref<8x128xf32, #tpu.memory_space<vmem>>, vector<8x128xf32>,
      %cst_73 = arith.constant 0.000000e+00 : f32
      %106 = vector.broadcast %cst_73 : f32 to vector<8x128xf32>
      %c0_74 = arith.constant 0 : index
      %c0_75 = arith.constant 0 : index
      %107 = vector.load %arg11[%c0_74, %c0_75] : memref<8x128xf32, #tpu.memory_space<vmem>>, vector<8x128xf32>
      tpu.vector_store %arg11[%c0_74, %c0_75], %106 {strides = array<i32>} : memref<8x128xf32, #tpu.memory_space<vmem>>, vector<8x128xf32>,
      %cst_76 = arith.constant 0.000000e+00 : f32
      %108 = vector.broadcast %cst_76 : f32 to vector<8x128xf32>
      %c0_77 = arith.constant 0 : index
      %c0_78 = arith.constant 0 : index
      %109 = vector.load %arg12[%c0_77, %c0_78] : memref<8x128xf32, #tpu.memory_space<vmem>>, vector<8x128xf32>
      tpu.vector_store %arg12[%c0_77, %c0_78], %108 {strides = array<i32>} : memref<8x128xf32, #tpu.memory_space<vmem>>, vector<8x128xf32>,
      %cst_79 = arith.constant 0.000000e+00 : f32
      %110 = vector.broadcast %cst_79 : f32 to vector<8x128xf32>
      %c0_80 = arith.constant 0 : index
      %c0_81 = arith.constant 0 : index
      %111 = vector.load %arg13[%c0_80, %c0_81] : memref<8x128xf32, #tpu.memory_space<vmem>>, vector<8x128xf32>
      tpu.vector_store %arg13[%c0_80, %c0_81], %110 {strides = array<i32>} : memref<8x128xf32, #tpu.memory_space<vmem>>, vector<8x128xf32>,
    } else {
    }
    %c0 = arith.constant 0 : index
    %c0_1 = arith.constant 0 : index
    %c0_2 = arith.constant 0 : index
    %3 = vector.load %arg2[%c0, %c0_1, %c0_2] : memref<3x8x128xf32, #tpu.memory_space<vmem>>, vector<1x8x128xf32>
    %4 = vector.shape_cast %3 : vector<1x8x128xf32> to vector<8x128xf32>
    %c1 = arith.constant 1 : index
    %c0_3 = arith.constant 0 : index
    %c0_4 = arith.constant 0 : index
    %5 = vector.load %arg2[%c1, %c0_3, %c0_4] : memref<3x8x128xf32, #tpu.memory_space<vmem>>, vector<1x8x128xf32>
    %6 = vector.shape_cast %5 : vector<1x8x128xf32> to vector<8x128xf32>
    %c2 = arith.constant 2 : index
    %c0_5 = arith.constant 0 : index
    %c0_6 = arith.constant 0 : index
    %7 = vector.load %arg2[%c2, %c0_5, %c0_6] : memref<3x8x128xf32, #tpu.memory_space<vmem>>, vector<1x8x128xf32>
    %8 = vector.shape_cast %7 : vector<1x8x128xf32> to vector<8x128xf32>
    %c0_7 = arith.constant 0 : index
    %c0_8 = arith.constant 0 : index
    %c0_9 = arith.constant 0 : index
    %9 = vector.load %arg3[%c0_7, %c0_8, %c0_9] : memref<3x8x128xf32, #tpu.memory_space<vmem>>, vector<1x8x128xf32>
    %10 = vector.shape_cast %9 : vector<1x8x128xf32> to vector<8x128xf32>
    %c1_10 = arith.constant 1 : index
    %c0_11 = arith.constant 0 : index
    %c0_12 = arith.constant 0 : index
    %11 = vector.load %arg3[%c1_10, %c0_11, %c0_12] : memref<3x8x128xf32, #tpu.memory_space<vmem>>, vector<1x8x128xf32>
    %12 = vector.shape_cast %11 : vector<1x8x128xf32> to vector<8x128xf32>
    %c2_13 = arith.constant 2 : index
    %c0_14 = arith.constant 0 : index
    %c0_15 = arith.constant 0 : index
    %13 = vector.load %arg3[%c2_13, %c0_14, %c0_15] : memref<3x8x128xf32, #tpu.memory_space<vmem>>, vector<1x8x128xf32>
    %14 = vector.shape_cast %13 : vector<1x8x128xf32> to vector<8x128xf32>
    %15 = arith.subf %4, %10 : vector<8x128xf32>
    %16 = arith.subf %6, %12 : vector<8x128xf32>
    %17 = arith.subf %8, %14 : vector<8x128xf32>
    %18 = arith.mulf %15, %15 : vector<8x128xf32>
    %19 = arith.mulf %16, %16 : vector<8x128xf32>
    %20 = arith.addf %18, %19 : vector<8x128xf32>
    %21 = arith.mulf %17, %17 : vector<8x128xf32>
    %22 = arith.addf %20, %21 : vector<8x128xf32>
    %cst = arith.constant 0.000000e+00 : f32
    %23 = vector.broadcast %cst : f32 to vector<8x128xf32>
    %24 = arith.cmpf one, %10, %23 : vector<8x128xf32>
    %cst_16 = arith.constant 0.000000e+00 : f32
    %25 = vector.broadcast %cst_16 : f32 to vector<8x128xf32>
    %26 = arith.cmpf one, %12, %25 : vector<8x128xf32>
    %27 = arith.ori %24, %26 : vector<8x128xi1>
    %cst_17 = arith.constant 0.000000e+00 : f32
    %28 = vector.broadcast %cst_17 : f32 to vector<8x128xf32>
    %29 = arith.cmpf one, %14, %28 : vector<8x128xf32>
    %30 = arith.ori %27, %29 : vector<8x128xi1>
    %c0_18 = arith.constant 0 : index
    %c0_19 = arith.constant 0 : index
    %31 = vector.load %arg4[%c0_18, %c0_19] : memref<8x128xi8, #tpu.memory_space<vmem>>, vector<8x128xi8>
    %c0_i8 = arith.constant 0 : i8
    %32 = vector.broadcast %c0_i8 : i8 to vector<8x128xi8>
    %33 = arith.cmpi ne, %31, %32 : vector<8x128xi8>
    %34 = arith.andi %33, %30 : vector<8x128xi1>
    %35 = arith.extui %30 : vector<8x128xi1> to vector<8x128xi32>
    %36 = arith.sitofp %35 : vector<8x128xi32> to vector<8x128xf32>
    %37 = arith.extui %33 : vector<8x128xi1> to vector<8x128xi32>
    %38 = arith.sitofp %37 : vector<8x128xi32> to vector<8x128xf32>
    %39 = arith.extui %34 : vector<8x128xi1> to vector<8x128xi32>
    %40 = arith.sitofp %39 : vector<8x128xi32> to vector<8x128xf32>
    %c0_20 = arith.constant 0 : index
    %c0_21 = arith.constant 0 : index
    %41 = vector.load %arg8[%c0_20, %c0_21] : memref<8x128xf32, #tpu.memory_space<vmem>>, vector<8x128xf32>
    %42 = arith.addf %41, %40 : vector<8x128xf32>
    %c0_22 = arith.constant 0 : index
    %c0_23 = arith.constant 0 : index
    %43 = vector.load %arg8[%c0_22, %c0_23] : memref<8x128xf32, #tpu.memory_space<vmem>>, vector<8x128xf32>
    tpu.vector_store %arg8[%c0_22, %c0_23], %42 {strides = array<i32>} : memref<8x128xf32, #tpu.memory_space<vmem>>, vector<8x128xf32>,
    %c0_24 = arith.constant 0 : index
    %c0_25 = arith.constant 0 : index
    %44 = vector.load %arg9[%c0_24, %c0_25] : memref<8x128xf32, #tpu.memory_space<vmem>>, vector<8x128xf32>
    %45 = arith.addf %44, %38 : vector<8x128xf32>
    %c0_26 = arith.constant 0 : index
    %c0_27 = arith.constant 0 : index
    %46 = vector.load %arg9[%c0_26, %c0_27] : memref<8x128xf32, #tpu.memory_space<vmem>>, vector<8x128xf32>
    tpu.vector_store %arg9[%c0_26, %c0_27], %45 {strides = array<i32>} : memref<8x128xf32, #tpu.memory_space<vmem>>, vector<8x128xf32>,
    %c0_28 = arith.constant 0 : index
    %c0_29 = arith.constant 0 : index
    %47 = vector.load %arg10[%c0_28, %c0_29] : memref<8x128xf32, #tpu.memory_space<vmem>>, vector<8x128xf32>
    %48 = arith.addf %47, %36 : vector<8x128xf32>
    %c0_30 = arith.constant 0 : index
    %c0_31 = arith.constant 0 : index
    %49 = vector.load %arg10[%c0_30, %c0_31] : memref<8x128xf32, #tpu.memory_space<vmem>>, vector<8x128xf32>
    tpu.vector_store %arg10[%c0_30, %c0_31], %48 {strides = array<i32>} : memref<8x128xf32, #tpu.memory_space<vmem>>, vector<8x128xf32>,
    %c0_32 = arith.constant 0 : index
    %c0_33 = arith.constant 0 : index
    %50 = vector.load %arg11[%c0_32, %c0_33] : memref<8x128xf32, #tpu.memory_space<vmem>>, vector<8x128xf32>
    %51 = arith.mulf %22, %40 : vector<8x128xf32>
    %52 = arith.addf %50, %51 : vector<8x128xf32>
    %c0_34 = arith.constant 0 : index
    %c0_35 = arith.constant 0 : index
    %53 = vector.load %arg11[%c0_34, %c0_35] : memref<8x128xf32, #tpu.memory_space<vmem>>, vector<8x128xf32>
    tpu.vector_store %arg11[%c0_34, %c0_35], %52 {strides = array<i32>} : memref<8x128xf32, #tpu.memory_space<vmem>>, vector<8x128xf32>,
    %c0_36 = arith.constant 0 : index
    %c0_37 = arith.constant 0 : index
    %54 = vector.load %arg12[%c0_36, %c0_37] : memref<8x128xf32, #tpu.memory_space<vmem>>, vector<8x128xf32>
    %55 = arith.mulf %22, %36 : vector<8x128xf32>
    %56 = arith.addf %54, %55 : vector<8x128xf32>
    %c0_38 = arith.constant 0 : index
    %c0_39 = arith.constant 0 : index
    %57 = vector.load %arg12[%c0_38, %c0_39] : memref<8x128xf32, #tpu.memory_space<vmem>>, vector<8x128xf32>
    tpu.vector_store %arg12[%c0_38, %c0_39], %56 {strides = array<i32>} : memref<8x128xf32, #tpu.memory_space<vmem>>, vector<8x128xf32>,
    %c0_40 = arith.constant 0 : index
    %c0_41 = arith.constant 0 : index
    %58 = vector.load %arg5[%c0_40, %c0_41] : memref<8x1xf32, #tpu.memory_space<vmem>>, vector<8x1xf32>
    %c0_42 = arith.constant 0 : index
    %c0_43 = arith.constant 0 : index
    %59 = vector.load %arg6[%c0_42, %c0_43] : memref<1x128xf32, #tpu.memory_space<vmem>>, vector<1x128xf32>
    %c1_i32 = arith.constant 1 : i32
    %60 = tpu.dynamic_rotate %4 by %c1_i32 dim 1 : vector<8x128xf32>, i32 -> vector<8x128xf32>
    %c1_i32_44 = arith.constant 1 : i32
    %61 = tpu.dynamic_rotate %6 by %c1_i32_44 dim 1 : vector<8x128xf32>, i32 -> vector<8x128xf32>
    %c1_i32_45 = arith.constant 1 : i32
    %62 = tpu.dynamic_rotate %8 by %c1_i32_45 dim 1 : vector<8x128xf32>, i32 -> vector<8x128xf32>
    %63 = arith.subf %4, %60 : vector<8x128xf32>
    %64 = arith.subf %6, %61 : vector<8x128xf32>
    %65 = arith.subf %8, %62 : vector<8x128xf32>
    %66 = arith.mulf %63, %63 : vector<8x128xf32>
    %67 = arith.mulf %64, %64 : vector<8x128xf32>
    %68 = arith.addf %66, %67 : vector<8x128xf32>
    %69 = arith.mulf %65, %65 : vector<8x128xf32>
    %70 = arith.addf %68, %69 : vector<8x128xf32>
    %71 = math.sqrt %70 : vector<8x128xf32>
    %cst_46 = arith.constant 3.800000e+00 : f32
    %72 = vector.broadcast %cst_46 : f32 to vector<8x128xf32>
    %73 = arith.subf %71, %72 : vector<8x128xf32>
    %c0_47 = arith.constant 0 : index
    %c0_48 = arith.constant 0 : index
    %74 = vector.load %arg13[%c0_47, %c0_48] : memref<8x128xf32, #tpu.memory_space<vmem>>, vector<8x128xf32>
    %75 = arith.mulf %73, %73 : vector<8x128xf32>
    %76 = vector.broadcast %58 : vector<8x1xf32> to vector<8x128xf32>
    %77 = arith.mulf %75, %76 : vector<8x128xf32>
    %78 = vector.broadcast %59 : vector<1x128xf32> to vector<8x128xf32>
    %79 = arith.mulf %77, %78 : vector<8x128xf32>
    %80 = arith.addf %74, %79 : vector<8x128xf32>
    %c0_49 = arith.constant 0 : index
    %c0_50 = arith.constant 0 : index
    %81 = vector.load %arg13[%c0_49, %c0_50] : memref<8x128xf32, #tpu.memory_space<vmem>>, vector<8x128xf32>
    tpu.vector_store %arg13[%c0_49, %c0_50], %80 {strides = array<i32>} : memref<8x128xf32, #tpu.memory_space<vmem>>, vector<8x128xf32>,
    %c0_i32_51 = arith.constant 0 : i32
    %82 = arith.cmpi sgt, %arg1, %c0_i32_51 : i32
    %83 = arith.extui %82 : i1 to i32
    %c0_i32_52 = arith.constant 0 : i32
    %84 = arith.cmpi ne, %83, %c0_i32_52 : i32
    scf.if %84 {
      %100 = vector.extract_strided_slice %4 {offsets = [0, 0], sizes = [8, 1], strides = [1, 1]} : vector<8x128xf32> to vector<8x1xf32>
      %c0_64 = arith.constant 0 : index
      %c0_65 = arith.constant 0 : index
      %c0_66 = arith.constant 0 : index
      %101 = vector.load %arg14[%c0_64, %c0_65, %c0_66] : memref<3x8x1xf32, #tpu.memory_space<vmem>>, vector<1x8x1xf32>
      %102 = vector.shape_cast %101 : vector<1x8x1xf32> to vector<8x1xf32>
      %103 = arith.subf %100, %102 : vector<8x1xf32>
      %104 = vector.extract_strided_slice %6 {offsets = [0, 0], sizes = [8, 1], strides = [1, 1]} : vector<8x128xf32> to vector<8x1xf32>
      %c1_67 = arith.constant 1 : index
      %c0_68 = arith.constant 0 : index
      %c0_69 = arith.constant 0 : index
      %105 = vector.load %arg14[%c1_67, %c0_68, %c0_69] : memref<3x8x1xf32, #tpu.memory_space<vmem>>, vector<1x8x1xf32>
      %106 = vector.shape_cast %105 : vector<1x8x1xf32> to vector<8x1xf32>
      %107 = arith.subf %104, %106 : vector<8x1xf32>
      %108 = vector.extract_strided_slice %8 {offsets = [0, 0], sizes = [8, 1], strides = [1, 1]} : vector<8x128xf32> to vector<8x1xf32>
      %c2_70 = arith.constant 2 : index
      %c0_71 = arith.constant 0 : index
      %c0_72 = arith.constant 0 : index
      %109 = vector.load %arg14[%c2_70, %c0_71, %c0_72] : memref<3x8x1xf32, #tpu.memory_space<vmem>>, vector<1x8x1xf32>
      %110 = vector.shape_cast %109 : vector<1x8x1xf32> to vector<8x1xf32>
      %111 = arith.subf %108, %110 : vector<8x1xf32>
      %112 = arith.mulf %103, %103 : vector<8x1xf32>
      %113 = arith.mulf %107, %107 : vector<8x1xf32>
      %114 = arith.addf %112, %113 : vector<8x1xf32>
      %115 = arith.mulf %111, %111 : vector<8x1xf32>
      %116 = arith.addf %114, %115 : vector<8x1xf32>
      %117 = math.sqrt %116 : vector<8x1xf32>
      %cst_73 = arith.constant 3.800000e+00 : f32
      %118 = vector.broadcast %cst_73 : f32 to vector<8x1xf32>
      %119 = arith.subf %117, %118 : vector<8x1xf32>
      %c0_74 = arith.constant 0 : index
      %c0_75 = arith.constant 0 : index
      %120 = vector.load %arg13[%c0_74, %c0_75] : memref<8x128xf32, #tpu.memory_space<vmem>>, vector<8x1xf32>
      %121 = arith.mulf %119, %119 : vector<8x1xf32>
      %122 = arith.mulf %121, %58 : vector<8x1xf32>
      %123 = arith.addf %120, %122 : vector<8x1xf32>
      %c0_76 = arith.constant 0 : index
      %c0_77 = arith.constant 0 : index
      %124 = vector.load %arg13[%c0_76, %c0_77] : memref<8x128xf32, #tpu.memory_space<vmem>>, vector<8x1xf32>
      tpu.vector_store %arg13[%c0_76, %c0_77], %123 {strides = array<i32>} : memref<8x128xf32, #tpu.memory_space<vmem>>, vector<8x1xf32>,
    } else {
    }
    %85 = vector.extract_strided_slice %4 {offsets = [0, 127], sizes = [8, 1], strides = [1, 1]} : vector<8x128xf32> to vector<8x1xf32>
    %c0_53 = arith.constant 0 : index
    %c0_54 = arith.constant 0 : index
    %c0_55 = arith.constant 0 : index
    %86 = vector.load %arg14[%c0_53, %c0_54, %c0_55] : memref<3x8x1xf32, #tpu.memory_space<vmem>>, vector<1x8x1xf32>
    %87 = vector.shape_cast %86 : vector<1x8x1xf32> to vector<8x1xf32>
    %88 = vector.shape_cast %85 : vector<8x1xf32> to vector<1x8x1xf32>
    tpu.vector_store %arg14[%c0_53, %c0_54, %c0_55], %88 {strides = array<i32>} : memref<3x8x1xf32, #tpu.memory_space<vmem>>, vector<1x8x1xf32>,
    %89 = vector.extract_strided_slice %6 {offsets = [0, 127], sizes = [8, 1], strides = [1, 1]} : vector<8x128xf32> to vector<8x1xf32>
    %c1_56 = arith.constant 1 : index
    %c0_57 = arith.constant 0 : index
    %c0_58 = arith.constant 0 : index
    %90 = vector.load %arg14[%c1_56, %c0_57, %c0_58] : memref<3x8x1xf32, #tpu.memory_space<vmem>>, vector<1x8x1xf32>
    %91 = vector.shape_cast %90 : vector<1x8x1xf32> to vector<8x1xf32>
    %92 = vector.shape_cast %89 : vector<8x1xf32> to vector<1x8x1xf32>
    tpu.vector_store %arg14[%c1_56, %c0_57, %c0_58], %92 {strides = array<i32>} : memref<3x8x1xf32, #tpu.memory_space<vmem>>, vector<1x8x1xf32>,
    %93 = vector.extract_strided_slice %8 {offsets = [0, 127], sizes = [8, 1], strides = [1, 1]} : vector<8x128xf32> to vector<8x1xf32>
    %c2_59 = arith.constant 2 : index
    %c0_60 = arith.constant 0 : index
    %c0_61 = arith.constant 0 : index
    %94 = vector.load %arg14[%c2_59, %c0_60, %c0_61] : memref<3x8x1xf32, #tpu.memory_space<vmem>>, vector<1x8x1xf32>
    %95 = vector.shape_cast %94 : vector<1x8x1xf32> to vector<8x1xf32>
    %96 = vector.shape_cast %93 : vector<8x1xf32> to vector<1x8x1xf32>
    tpu.vector_store %arg14[%c2_59, %c0_60, %c0_61], %96 {strides = array<i32>} : memref<3x8x1xf32, #tpu.memory_space<vmem>>, vector<1x8x1xf32>,
    %c0_i32_62 = arith.constant 0 : i32
    %97 = arith.cmpi eq, %arg1, %c0_i32_62 : i32
    %98 = arith.extui %97 : i1 to i32
    %c0_i32_63 = arith.constant 0 : i32
    %99 = arith.cmpi ne, %98, %c0_i32_63 : i32
    scf.if %99 {
      %100 = tpu.iota {dimensions = array<i32: 1>} : vector<1x8xi32>
      %c0_64 = arith.constant 0 : index
      %c0_65 = arith.constant 0 : index
      %101 = vector.load %arg8[%c0_64, %c0_65] : memref<8x128xf32, #tpu.memory_space<vmem>>, vector<8x128xf32>
      %cst_66 = arith.constant dense<0.000000e+00> : vector<8xf32>
      %102 = vector.multi_reduction <add>, %101, %cst_66 [1] : vector<8x128xf32> to vector<8xf32>
      %103 = vector.shape_cast %102 : vector<8xf32> to vector<8x1xf32>
      %cst_67 = arith.constant dense<0.000000e+00> : vector<1xf32>
      %104 = vector.multi_reduction <add>, %103, %cst_67 [0] : vector<8x1xf32> to vector<1xf32>
      %105 = vector.shape_cast %104 : vector<1xf32> to vector<1x1xf32>
      %c0_i32_68 = arith.constant 0 : i32
      %106 = vector.broadcast %c0_i32_68 : i32 to vector<1x8xi32>
      %107 = arith.cmpi eq, %100, %106 : vector<1x8xi32>
      %108 = arith.extui %107 : vector<1x8xi1> to vector<1x8xi32>
      %109 = arith.sitofp %108 : vector<1x8xi32> to vector<1x8xf32>
      %110 = vector.broadcast %105 : vector<1x1xf32> to vector<1x8xf32>
      %111 = arith.mulf %110, %109 : vector<1x8xf32>
      %c0_69 = arith.constant 0 : index
      %c0_70 = arith.constant 0 : index
      %112 = vector.load %arg9[%c0_69, %c0_70] : memref<8x128xf32, #tpu.memory_space<vmem>>, vector<8x128xf32>
      %cst_71 = arith.constant dense<0.000000e+00> : vector<8xf32>
      %113 = vector.multi_reduction <add>, %112, %cst_71 [1] : vector<8x128xf32> to vector<8xf32>
      %114 = vector.shape_cast %113 : vector<8xf32> to vector<8x1xf32>
      %cst_72 = arith.constant dense<0.000000e+00> : vector<1xf32>
      %115 = vector.multi_reduction <add>, %114, %cst_72 [0] : vector<8x1xf32> to vector<1xf32>
      %116 = vector.shape_cast %115 : vector<1xf32> to vector<1x1xf32>
      %c1_i32_73 = arith.constant 1 : i32
      %117 = vector.broadcast %c1_i32_73 : i32 to vector<1x8xi32>
      %118 = arith.cmpi eq, %100, %117 : vector<1x8xi32>
      %119 = arith.extui %118 : vector<1x8xi1> to vector<1x8xi32>
      %120 = arith.sitofp %119 : vector<1x8xi32> to vector<1x8xf32>
      %121 = vector.broadcast %116 : vector<1x1xf32> to vector<1x8xf32>
      %122 = arith.mulf %121, %120 : vector<1x8xf32>
      %123 = arith.addf %111, %122 : vector<1x8xf32>
      %c0_74 = arith.constant 0 : index
      %c0_75 = arith.constant 0 : index
      %124 = vector.load %arg10[%c0_74, %c0_75] : memref<8x128xf32, #tpu.memory_space<vmem>>, vector<8x128xf32>
      %cst_76 = arith.constant dense<0.000000e+00> : vector<8xf32>
      %125 = vector.multi_reduction <add>, %124, %cst_76 [1] : vector<8x128xf32> to vector<8xf32>
      %126 = vector.shape_cast %125 : vector<8xf32> to vector<8x1xf32>
      %cst_77 = arith.constant dense<0.000000e+00> : vector<1xf32>
      %127 = vector.multi_reduction <add>, %126, %cst_77 [0] : vector<8x1xf32> to vector<1xf32>
      %128 = vector.shape_cast %127 : vector<1xf32> to vector<1x1xf32>
      %c2_i32 = arith.constant 2 : i32
      %129 = vector.broadcast %c2_i32 : i32 to vector<1x8xi32>
      %130 = arith.cmpi eq, %100, %129 : vector<1x8xi32>
      %131 = arith.extui %130 : vector<1x8xi1> to vector<1x8xi32>
      %132 = arith.sitofp %131 : vector<1x8xi32> to vector<1x8xf32>
      %133 = vector.broadcast %128 : vector<1x1xf32> to vector<1x8xf32>
      %134 = arith.mulf %133, %132 : vector<1x8xf32>
      %135 = arith.addf %123, %134 : vector<1x8xf32>
      %c0_78 = arith.constant 0 : index
      %c0_79 = arith.constant 0 : index
      %136 = vector.load %arg11[%c0_78, %c0_79] : memref<8x128xf32, #tpu.memory_space<vmem>>, vector<8x128xf32>
      %cst_80 = arith.constant dense<0.000000e+00> : vector<8xf32>
      %137 = vector.multi_reduction <add>, %136, %cst_80 [1] : vector<8x128xf32> to vector<8xf32>
      %138 = vector.shape_cast %137 : vector<8xf32> to vector<8x1xf32>
      %cst_81 = arith.constant dense<0.000000e+00> : vector<1xf32>
      %139 = vector.multi_reduction <add>, %138, %cst_81 [0] : vector<8x1xf32> to vector<1xf32>
      %140 = vector.shape_cast %139 : vector<1xf32> to vector<1x1xf32>
      %c3_i32 = arith.constant 3 : i32
      %141 = vector.broadcast %c3_i32 : i32 to vector<1x8xi32>
      %142 = arith.cmpi eq, %100, %141 : vector<1x8xi32>
      %143 = arith.extui %142 : vector<1x8xi1> to vector<1x8xi32>
      %144 = arith.sitofp %143 : vector<1x8xi32> to vector<1x8xf32>
      %145 = vector.broadcast %140 : vector<1x1xf32> to vector<1x8xf32>
      %146 = arith.mulf %145, %144 : vector<1x8xf32>
      %147 = arith.addf %135, %146 : vector<1x8xf32>
      %c0_82 = arith.constant 0 : index
      %c0_83 = arith.constant 0 : index
      %148 = vector.load %arg12[%c0_82, %c0_83] : memref<8x128xf32, #tpu.memory_space<vmem>>, vector<8x128xf32>
      %cst_84 = arith.constant dense<0.000000e+00> : vector<8xf32>
      %149 = vector.multi_reduction <add>, %148, %cst_84 [1] : vector<8x128xf32> to vector<8xf32>
      %150 = vector.shape_cast %149 : vector<8xf32> to vector<8x1xf32>
      %cst_85 = arith.constant dense<0.000000e+00> : vector<1xf32>
      %151 = vector.multi_reduction <add>, %150, %cst_85 [0] : vector<8x1xf32> to vector<1xf32>
      %152 = vector.shape_cast %151 : vector<1xf32> to vector<1x1xf32>
      %c4_i32 = arith.constant 4 : i32
      %153 = vector.broadcast %c4_i32 : i32 to vector<1x8xi32>
      %154 = arith.cmpi eq, %100, %153 : vector<1x8xi32>
      %155 = arith.extui %154 : vector<1x8xi1> to vector<1x8xi32>
      %156 = arith.sitofp %155 : vector<1x8xi32> to vector<1x8xf32>
      %157 = vector.broadcast %152 : vector<1x1xf32> to vector<1x8xf32>
      %158 = arith.mulf %157, %156 : vector<1x8xf32>
      %159 = arith.addf %147, %158 : vector<1x8xf32>
      %c0_86 = arith.constant 0 : index
      %c0_87 = arith.constant 0 : index
      %160 = vector.load %arg13[%c0_86, %c0_87] : memref<8x128xf32, #tpu.memory_space<vmem>>, vector<8x128xf32>
      %cst_88 = arith.constant dense<0.000000e+00> : vector<8xf32>
      %161 = vector.multi_reduction <add>, %160, %cst_88 [1] : vector<8x128xf32> to vector<8xf32>
      %162 = vector.shape_cast %161 : vector<8xf32> to vector<8x1xf32>
      %cst_89 = arith.constant dense<0.000000e+00> : vector<1xf32>
      %163 = vector.multi_reduction <add>, %162, %cst_89 [0] : vector<8x1xf32> to vector<1xf32>
      %164 = vector.shape_cast %163 : vector<1xf32> to vector<1x1xf32>
      %c5_i32 = arith.constant 5 : i32
      %165 = vector.broadcast %c5_i32 : i32 to vector<1x8xi32>
      %166 = arith.cmpi eq, %100, %165 : vector<1x8xi32>
      %167 = arith.extui %166 : vector<1x8xi1> to vector<1x8xi32>
      %168 = arith.sitofp %167 : vector<1x8xi32> to vector<1x8xf32>
      %169 = vector.broadcast %164 : vector<1x1xf32> to vector<1x8xf32>
      %170 = arith.mulf %169, %168 : vector<1x8xf32>
      %171 = arith.addf %159, %170 : vector<1x8xf32>
      %c0_90 = arith.constant 0 : index
      %c0_91 = arith.constant 0 : index
      %c0_92 = arith.constant 0 : index
      %172 = vector.load %arg7[%c0_90, %c0_91, %c0_92] : memref<1x1x8xf32, #tpu.memory_space<vmem>>, vector<1x1x8xf32>
      %173 = vector.shape_cast %172 : vector<1x1x8xf32> to vector<1x8xf32>
      %174 = vector.shape_cast %171 : vector<1x8xf32> to vector<1x1x8xf32>
      tpu.vector_store %arg7[%c0_90, %c0_91, %c0_92], %174 {strides = array<i32>} : memref<1x1x8xf32, #tpu.memory_space<vmem>>, vector<1x1x8xf32>,
    } else {
    }
    return
  }
  func.func @transform_0(%arg0: i32, %arg1: i32) -> (i32, i32, i32) {
    %c0_i32 = arith.constant 0 : i32
    %c0_i32_0 = arith.constant 0 : i32
    return %c0_i32, %arg0, %arg1 : i32, i32, i32
  }
  func.func @transform_1(%arg0: i32, %arg1: i32) -> (i32, i32, i32) {
    %c0_i32 = arith.constant 0 : i32
    %c0_i32_0 = arith.constant 0 : i32
    return %c0_i32, %arg0, %arg1 : i32, i32, i32
  }
  func.func @transform_2(%arg0: i32, %arg1: i32) -> (i32, i32) {
    %c0_i32 = arith.constant 0 : i32
    return %arg0, %arg1 : i32, i32
  }
  func.func @transform_3(%arg0: i32, %arg1: i32) -> (i32, i32) {
    %c0_i32 = arith.constant 0 : i32
    %c0_i32_0 = arith.constant 0 : i32
    return %arg0, %c0_i32 : i32, i32
  }
  func.func @transform_4(%arg0: i32, %arg1: i32) -> (i32, i32) {
    %c0_i32 = arith.constant 0 : i32
    %c0_i32_0 = arith.constant 0 : i32
    return %c0_i32, %arg1 : i32, i32
  }
  func.func @transform_5(%arg0: i32, %arg1: i32) -> (i32, i32, i32) {
    %c0_i32 = arith.constant 0 : i32
    %c0_i32_0 = arith.constant 0 : i32
    %c0_i32_1 = arith.constant 0 : i32
    return %arg0, %c0_i32, %c0_i32_0 : i32, i32, i32
  }
}

</mosaic_0001>

<llo_original>
// kernel: masked_mse_loss.1
$region0: #{masked_mse_loss.1}
  #allocation0 [shape = 'u32[]', space=smem, size = 0x4, offset = 0x4, fixed_abs, tag = 'smem constant byte address 0x4 - core index']
  #allocation1 [shape = 'u32[144,128]{1,0:T(1,128)}', space=vmem, size = 0x12000, scoped, tag = 'internal scratch']
  #allocation2 [shape = 'f32[8,128]{1,0:T(8,128)}', space=vmem, size = 0x1000, scoped, tag = 'scratch operand']
  #allocation3 [shape = 'f32[8,128]{1,0:T(8,128)}', space=vmem, size = 0x1000, scoped, tag = 'scratch operand']
  #allocation4 [shape = 'f32[8,128]{1,0:T(8,128)}', space=vmem, size = 0x1000, scoped, tag = 'scratch operand']
  #allocation5 [shape = 'f32[8,128]{1,0:T(8,128)}', space=vmem, size = 0x1000, scoped, tag = 'scratch operand']
  #allocation6 [shape = 'f32[8,128]{1,0:T(8,128)}', space=vmem, size = 0x1000, scoped, tag = 'scratch operand']
  #allocation7 [shape = 'f32[8,128]{1,0:T(8,128)}', space=vmem, size = 0x1000, scoped, tag = 'scratch operand']
  #allocation8 [shape = 'f32[3,8,1]{2,1,0:T(8,128)}', space=vmem, size = 0x3000, scoped, tag = 'scratch operand']
  %s0 = inlined_call_operand.vmem [shape: f32[3,8,128], index: 0, kind: input, shape index: {}]
  %s1 = inlined_call_operand.vmem [shape: f32[3,8,128], index: 1, kind: input, shape index: {}]
  %s2 = inlined_call_operand.vmem [shape: s8[8,128], index: 2, kind: input, shape index: {}]
  %s3 = inlined_call_operand.vmem [shape: f32[8,1], index: 3, kind: input, shape index: {}]
  %s4 = inlined_call_operand.vmem [shape: f32[1,128], index: 4, kind: input, shape index: {}]
  %s5 = inlined_call_operand.vmem [shape: f32[1,1,8], index: 5, kind: output, shape index: {}]
  %s6 = sld [smem:[#allocation0]]
  $region42: #{masked_mse_loss.1} parent=0
    _
  %s8 = ssub.s32 1, %s6
  %s9 = scalar_select 0, %s8, %s6
  // Predicated region
  $region2: #{masked_mse_loss.1} parent=0 // pred_check
    _
  $region3: #{masked_mse_loss.1} parent=0 // pred_check_branch
    %11 = sbr.rel (0) target = $region5
  $region4: #{masked_mse_loss.1} parent=0 // pred_region
    _
  $region5: #{masked_mse_loss.1} parent=0 // pred_fallthru
    _
  // Predicated region
  $region6: #{masked_mse_loss.1} parent=0 // pred_check
    _
  $region7: #{masked_mse_loss.1} parent=0 // pred_check_branch
    %13 = sbr.rel (0) target = $region9
  $region8: #{masked_mse_loss.1} parent=0 // pred_region
    _
  $region9: #{masked_mse_loss.1} parent=0 // pred_fallthru
    _
  // Predicated region
  $region10: #{masked_mse_loss.1} parent=0 // pred_check
    _
  $region11: #{masked_mse_loss.1} parent=0 // pred_check_branch
    %15 = sbr.rel (0) target = $region13
  $region12: #{masked_mse_loss.1} parent=0 // pred_region
    _
  $region13: #{masked_mse_loss.1} parent=0 // pred_fallthru
    _
  // Predicated region
  $region14: #{masked_mse_loss.1} parent=0 // pred_check
    _
  $region15: #{masked_mse_loss.1} parent=0 // pred_check_branch
    %17 = sbr.rel (0) target = $region17
  $region16: #{masked_mse_loss.1} parent=0 // pred_region
    _
  $region17: #{masked_mse_loss.1} parent=0 // pred_fallthru
    _
  // Predicated region
  $region18: #{masked_mse_loss.1} parent=0 // pred_check
    _
  $region19: #{masked_mse_loss.1} parent=0 // pred_check_branch
    %19 = sbr.rel (0) target = $region21
  $region20: #{masked_mse_loss.1} parent=0 // pred_region
    _
  $region21: #{masked_mse_loss.1} parent=0 // pred_fallthru
    _
  %p22 = scmp.eq.s32.totalorder 0, 0
  // Predicated region
  $region22: #{masked_mse_loss.1} parent=0 // pred_check
    %p23 = pneg %p22
  $region23: #{masked_mse_loss.1} parent=0 // pred_check_branch
    %25 = sbr.rel (%p23) target = $region25
  $region24: #{masked_mse_loss.1} parent=0 // pred_region
    %26 = vst [vmem:[#allocation2] sm:$0xff] 0.0
    %27 = vst [vmem:[#allocation3] sm:$0xff] 0.0
    %28 = vst [vmem:[#allocation4] sm:$0xff] 0.0
    %29 = vst [vmem:[#allocation5] sm:$0xff] 0.0
    %30 = vst [vmem:[#allocation6] sm:$0xff] 0.0
    %31 = vst [vmem:[#allocation7] sm:$0xff] 0.0
  $region25: #{masked_mse_loss.1} parent=0 // pred_fallthru
    _
  %v32 = vld [vmem:[%s0] sm:$0xff]
  %s33 = scalar_lea.vmem %s0, 8
  %v34 = vld [vmem:[%s33] sm:$0xff]
  %s35 = scalar_lea.vmem %s0, 16
  %v36 = vld [vmem:[%s35] sm:$0xff]
  %v37 = vld [vmem:[%s1] sm:$0xff]
  %s38 = scalar_lea.vmem %s1, 8
  %v39 = vld [vmem:[%s38] sm:$0xff]
  %s40 = scalar_lea.vmem %s1, 16
  %v41 = vld [vmem:[%s40] sm:$0xff]
  %v42 = vsub.f32 %v32, %v37
  %v43 = vsub.f32 %v34, %v39
  %v44 = vsub.f32 %v36, %v41
  %v45 = vmul.f32 %v42, %v42
  %v46 = vmul.f32 %v43, %v43
  %v47 = vadd.f32 %v45, %v46
  %v48 = vmul.f32 %v44, %v44
  %v49 = vadd.f32 %v47, %v48
  %vm50 = vcmp.ne.f32.partialorder %v37, 0.0
  %vm51 = vcmp.ne.f32.partialorder %v39, 0.0
  %vm52 = vmor %vm50, %vm51
  %vm53 = vcmp.ne.f32.partialorder %v41, 0.0
  %vm54 = vmor %vm52, %vm53
  %v55 = vld [vmem:[%s2] sm:$0x3]
  %vm56 = vnez %v55
  %vm57 = vmpackc.low %vm54, %vm54
  %vm58 = vmpackc.even %vm57, %vm57
  %vm59 = vmand %vm56, %vm58
  %v60 = vsel %vm54, 1, 0
  %v61 = vcvt.s32.f32 %v60
  %v62 = vsel %vm56, 16843009, 0
  %v63 = vunpack.c.0.s8 %v62
  %vm64 = vcmp.ne.s32.totalorder %v63, 0
  %v65 = vsel %vm64, 1, 0
  %v66 = vcvt.s32.f32 %v65
  %v67 = vsel %vm59, 16843009, 0
  %v68 = vunpack.c.0.s8 %v67
  %vm69 = vcmp.ne.s32.totalorder %v68, 0
  %v70 = vsel %vm69, 1, 0
  %v71 = vcvt.s32.f32 %v70
  %v72 = vld [vmem:[#allocation2] sm:$0xff]
  %v73 = vadd.f32 %v72, %v71
  %74 = vst [vmem:[#allocation2] sm:$0xff] %v73
  %v75 = vld [vmem:[#allocation3] sm:$0xff]
  %v76 = vadd.f32 %v75, %v66
  %77 = vst [vmem:[#allocation3] sm:$0xff] %v76
  %v78 = vld [vmem:[#allocation4] sm:$0xff]
  %v79 = vadd.f32 %v78, %v61
  %80 = vst [vmem:[#allocation4] sm:$0xff] %v79
  %v81 = vld [vmem:[#allocation5] sm:$0xff]
  %v82 = vmul.f32 %v49, %v71
  %v83 = vadd.f32 %v81, %v82
  %84 = vst [vmem:[#allocation5] sm:$0xff] %v83
  %v85 = vld [vmem:[#allocation6] sm:$0xff]
  %v86 = vmul.f32 %v49, %v61
  %v87 = vadd.f32 %v85, %v86
  %88 = vst [vmem:[#allocation6] sm:$0xff] %v87
  %v89 = vld [vmem:[%s3] sm:$0xff]
  %v90 = vld [vmem:[%s4] sm:$0x1]
  %91 = vrot.lane.b32.xlu0 %v32, 1
  %v92 = vpop.permute.xlu0 %91
  %93 = vrot.lane.b32.xlu0 %v34, 1
  %v94 = vpop.permute.xlu0 %93
  %95 = vrot.lane.b32.xlu0 %v36, 1
  %v96 = vpop.permute.xlu0 %95
  %v97 = vsub.f32 %v32, %v92
  %v98 = vsub.f32 %v34, %v94
  %v99 = vsub.f32 %v36, %v96
  %v100 = vmul.f32 %v97, %v97
  %v101 = vmul.f32 %v98, %v98
  %v102 = vadd.f32 %v100, %v101
  %v103 = vmul.f32 %v99, %v99
  %v104 = vadd.f32 %v102, %v103
  %v105 = vrsqrt.pop %v104
  %v106 = vmul.f32 %v104, %v105
  %vm107 = vcmp.eq.f32.partialorder %v104, inf
  %v108 = vsel %vm107, %v104, %v106
  %vm109 = vcmp.eq.f32.partialorder %v104, 0.0
  %v110 = vand.u32 %v104, 2147483648
  %v111 = vsel %vm109, %v110, %v108
  %v112 = vsub.f32 %v111, 3.8
  %v113 = vld [vmem:[#allocation7] sm:$0xff]
  %v114 = vmul.f32 %v112, %v112
  %116 = vset.pattern.permute.xlu0 0
  %117 = vperm.xlu0 %116, %v89
  %v118 = vpop.permute.xlu0 %117
  %v120 = vmul.f32 %v114, %v118
  %v122 = vlaneseq
  %v123 = vshrl.u32 %v122, 7
  %v124 = vsub.s32 0, %v123
  %v125 = vrot.slane %v90, %v124
  %v127 = vmul.f32 %v120, %v125
  %v128 = vadd.f32 %v113, %v127
  %129 = vst [vmem:[#allocation7] sm:$0xff] %v128
  %p130 = scmp.gt.s32.totalorder 0, 0
  // Predicated region
  $region26: #{masked_mse_loss.1} parent=0 // pred_check
    %p131 = pneg %p130
  $region27: #{masked_mse_loss.1} parent=0 // pred_check_branch
    %133 = sbr.rel (%p131) target = $region29
  $region28: #{masked_mse_loss.1} parent=0 // pred_region
    %v134 = vld [vmem:[#allocation8] sm:$0xff]
    %v135 = vsub.f32 %v32, %v134
    %s136 = scalar_lea.vmem [#allocation8], 8
    %v137 = vld [vmem:[%s136] sm:$0xff]
    %v138 = vsub.f32 %v34, %v137
    %s139 = scalar_lea.vmem [#allocation8], 16
    %v140 = vld [vmem:[%s139] sm:$0xff]
    %v141 = vsub.f32 %v36, %v140
    %v142 = vmul.f32 %v135, %v135
    %v143 = vmul.f32 %v138, %v138
    %v144 = vadd.f32 %v142, %v143
    %v145 = vmul.f32 %v141, %v141
    %v146 = vadd.f32 %v144, %v145
    %v147 = vrsqrt.pop %v146
    %v148 = vmul.f32 %v146, %v147
    %vm149 = vcmp.eq.f32.partialorder %v146, inf
    %v150 = vsel %vm149, %v146, %v148
    %vm151 = vcmp.eq.f32.partialorder %v146, 0.0
    %v152 = vand.u32 %v146, 2147483648
    %v153 = vsel %vm151, %v152, %v150
    %v154 = vsub.f32 %v153, 3.8
    %v155 = vld [vmem:[#allocation7] sm:$0xff]
    %v156 = vmul.f32 %v154, %v154
    %v157 = vmul.f32 %v156, %v89
    %v158 = vadd.f32 %v155, %v157
    %vm159 = vcmask 7168
    %160 = vst.msk [vmem:[#allocation7] sm:$0xff] %vm159, %v158
  $region29: #{masked_mse_loss.1} parent=0 // pred_fallthru
    _
  %162 = vrot.lane.b32.xlu0 %v32, 1
  %v163 = vpop.permute.xlu0 %162
  %vm165 = vcmask 7168
  %166 = vst.msk [vmem:[#allocation8] sm:$0xff] %vm165, %v163
  %168 = vrot.lane.b32.xlu0 %v34, 1
  %v169 = vpop.permute.xlu0 %168
  %s171 = scalar_lea.vmem [#allocation8], 8
  %172 = vst.msk [vmem:[%s171] sm:$0xff] %vm165, %v169
  %174 = vrot.lane.b32.xlu0 %v36, 1
  %v175 = vpop.permute.xlu0 %174
  %s177 = scalar_lea.vmem [#allocation8], 16
  %178 = vst.msk [vmem:[%s177] sm:$0xff] %vm165, %v175
  // Predicated region
  $region30: #{masked_mse_loss.1} parent=0 // pred_check
    %p179 = pneg %p22
  $region31: #{masked_mse_loss.1} parent=0 // pred_check_branch
    %181 = sbr.rel (%p179) target = $region33
  $region32: #{masked_mse_loss.1} parent=0 // pred_region
    %v182 = vlaneseq
    %v183 = vand.u32 %v182, 127
    %v184 = vld [vmem:[#allocation2] sm:$0xff]
    %185 = vadd.xlane.f32.xlu0 %v184
    %v186 = vpop.xlane.xlu0 %185
    %v187 = vrot.slane %v186, 4
    %v188 = vadd.f32 %v186, %v187
    %v189 = vrot.slane %v188, 2
    %v190 = vadd.f32 %v188, %v189
    %v191 = vrot.slane %v190, 1
    %v192 = vadd.f32 %v190, %v191
    %vm193 = vcmp.eq.s32.totalorder %v183, 0
    %v194 = vsel %vm193, 1, 0
    %v195 = vcvt.s32.f32 %v194
    %v196 = vmul.f32 %v192, %v195
    %v197 = vld [vmem:[#allocation3] sm:$0xff]
    %198 = vadd.xlane.f32.xlu0 %v197
    %v199 = vpop.xlane.xlu0 %198
    %v200 = vrot.slane %v199, 4
    %v201 = vadd.f32 %v199, %v200
    %v202 = vrot.slane %v201, 2
    %v203 = vadd.f32 %v201, %v202
    %v204 = vrot.slane %v203, 1
    %v205 = vadd.f32 %v203, %v204
    %vm206 = vcmp.eq.s32.totalorder %v183, 1
    %v207 = vsel %vm206, 1, 0
    %v208 = vcvt.s32.f32 %v207
    %v209 = vmul.f32 %v205, %v208
    %v210 = vadd.f32 %v196, %v209
    %v211 = vld [vmem:[#allocation4] sm:$0xff]
    %212 = vadd.xlane.f32.xlu0 %v211
    %v213 = vpop.xlane.xlu0 %212
    %v214 = vrot.slane %v213, 4
    %v215 = vadd.f32 %v213, %v214
    %v216 = vrot.slane %v215, 2
    %v217 = vadd.f32 %v215, %v216
    %v218 = vrot.slane %v217, 1
    %v219 = vadd.f32 %v217, %v218
    %vm220 = vcmp.eq.s32.totalorder %v183, 2
    %v221 = vsel %vm220, 1, 0
    %v222 = vcvt.s32.f32 %v221
    %v223 = vmul.f32 %v219, %v222
    %v224 = vadd.f32 %v210, %v223
    %v225 = vld [vmem:[#allocation5] sm:$0xff]
    %226 = vadd.xlane.f32.xlu0 %v225
    %v227 = vpop.xlane.xlu0 %226
    %v228 = vrot.slane %v227, 4
    %v229 = vadd.f32 %v227, %v228
    %v230 = vrot.slane %v229, 2
    %v231 = vadd.f32 %v229, %v230
    %v232 = vrot.slane %v231, 1
    %v233 = vadd.f32 %v231, %v232
    %vm234 = vcmp.eq.s32.totalorder %v183, 3
    %v235 = vsel %vm234, 1, 0
    %v236 = vcvt.s32.f32 %v235
    %v237 = vmul.f32 %v233, %v236
    %v238 = vadd.f32 %v224, %v237
    %v239 = vld [vmem:[#allocation6] sm:$0xff]
    %240 = vadd.xlane.f32.xlu0 %v239
    %v241 = vpop.xlane.xlu0 %240
    %v242 = vrot.slane %v241, 4
    %v243 = vadd.f32 %v241, %v242
    %v244 = vrot.slane %v243, 2
    %v245 = vadd.f32 %v243, %v244
    %v246 = vrot.slane %v245, 1
    %v247 = vadd.f32 %v245, %v246
    %vm248 = vcmp.eq.s32.totalorder %v183, 4
    %v249 = vsel %vm248, 1, 0
    %v250 = vcvt.s32.f32 %v249
    %v251 = vmul.f32 %v247, %v250
    %v252 = vadd.f32 %v238, %v251
    %v253 = vld [vmem:[#allocation7] sm:$0xff]
    %254 = vadd.xlane.f32.xlu0 %v253
    %v255 = vpop.xlane.xlu0 %254
    %v256 = vrot.slane %v255, 4
    %v257 = vadd.f32 %v255, %v256
    %v258 = vrot.slane %v257, 2
    %v259 = vadd.f32 %v257, %v258
    %v260 = vrot.slane %v259, 1
    %v261 = vadd.f32 %v259, %v260
    %vm262 = vcmp.eq.s32.totalorder %v183, 5
    %v263 = vsel %vm262, 1, 0
    %v264 = vcvt.s32.f32 %v263
    %v265 = vmul.f32 %v261, %v264
    %v266 = vadd.f32 %v252, %v265
    %vm267 = vcmask 57344
    %268 = vst.msk [vmem:[%s5] sm:$0x1] %vm267, %v266
  $region33: #{masked_mse_loss.1} parent=0 // pred_fallthru
    _
  // Predicated region
  $region34: #{masked_mse_loss.1} parent=0 // pred_check
    _
  $region35: #{masked_mse_loss.1} parent=0 // pred_check_branch
    %270 = sbr.rel (0) target = $region37
  $region36: #{masked_mse_loss.1} parent=0 // pred_region
    _
  $region37: #{masked_mse_loss.1} parent=0 // pred_fallthru
    _
  // Predicated region
  $region38: #{masked_mse_loss.1} parent=0 // pred_check
    _
  $region39: #{masked_mse_loss.1} parent=0 // pred_check_branch
    %272 = sbr.rel (0) target = $region41
  $region40: #{masked_mse_loss.1} parent=0 // pred_region
    _
  $region41: #{masked_mse_loss.1} parent=0 // pred_fallthru
    _

</llo_original>
